<compile_context>
chip_gen: v7x
topology: tpu7x:2x2x1
jax: 0.10.0
libtpu: 0.0.40
codegen_flags: <defaults>
</compile_context>

<pallas_src>
import jax
import jax.numpy as jnp
from jax import lax
from jax.experimental import pallas as pl
from jax.experimental.pallas import tpu as pltpu


def attention_kernel(enc_ref, we_ref, hvec_ref, v_ref, out_ref):
    # enc:  [S, E]   encoder outputs
    # we:   [E, E]   encoder half of the Linear weight (PyTorch [out, in] layout)
    # hvec: [1, E]   precomputed  hidden @ W_h^T + bias   (S-invariant)
    # v:    [1, E]
    # out:  [1, S]

    # Single projection matmul: contract the lane (in-feature) dims of enc and
    # we -> enc @ W_e^T with no transpose/relayout of either operand.
    e_proj = lax.dot_general(enc_ref[...], we_ref[...],
                             (((1,), (1,)), ((), ())),
                             preferred_element_type=jnp.float32)       # [S, E]
    alpha = jnp.tanh(e_proj + hvec_ref[...])                           # [S, E]

    # e = v @ alpha^T, expressed as a lane-dim contraction (no alpha.T / XLU op).
    e = lax.dot_general(v_ref[...], alpha,
                        (((1,), (1,)), ((), ())),
                        preferred_element_type=jnp.float32)            # [1, S]

    # Softmax over seq_len (lane axis); reciprocal goes to the EUP slot.
    m = jnp.max(e, axis=-1, keepdims=True)
    p = jnp.exp(e - m)
    denom = jnp.sum(p, axis=-1, keepdims=True)
    out_ref[...] = p * pl.reciprocal(denom, approx=True)


def attention_forward(hidden, encoder_outputs, weight, bias, v):
    """
    hidden:          [1, 1, E]  float32
    encoder_outputs: [S, E]     float32
    weight:          [E, 2E]    (PyTorch Linear layout: [out, in])
    bias:            [E]
    v:               [E]
    returns:         [1, S]
    """
    E = hidden.shape[-1]
    S = encoder_outputs.shape[0]

    hid2d = hidden.reshape(1, E)
    w_h = weight[:, :E]          # hidden half of the cat-Linear weight
    w_e = weight[:, E:]          # encoder half (passed untransposed to the kernel)

    # S-invariant part of the cat-Linear, folded once:
    #   hvec = hidden @ W_h^T + bias       (lane-dim contraction, no transpose)
    hvec = lax.dot_general(hid2d, w_h, (((1,), (1,)), ((), ())),
                           preferred_element_type=jnp.float32) + bias[None, :]
    v2d = v.reshape(1, E)

    out = pl.pallas_call(
        attention_kernel,
        out_shape=jax.ShapeDtypeStruct((1, S), jnp.float32),
        in_specs=[pl.BlockSpec(memory_space=pltpu.MemorySpace.VMEM)] * 4,
        out_specs=pl.BlockSpec(memory_space=pltpu.MemorySpace.VMEM),
    )(encoder_outputs, w_e, hvec, v2d)
    return out  # [1, S] == [b, seq_len]


def attention_reference(hidden, encoder_outputs, weight, bias, v):
    """Pure-JAX reference mirroring the PyTorch forward exactly (b = 1)."""
    S = encoder_outputs.shape[0]
    hid_rep = jnp.repeat(hidden, S, axis=1)                          # [1, S, E]
    cat = jnp.concatenate([hid_rep, encoder_outputs[None]], axis=2)  # [1, S, 2E]
    alpha = jnp.tanh(jnp.einsum('bsk,ek->bse', cat, weight) + bias)  # [1, S, E]
    alpha = jnp.transpose(alpha, (0, 2, 1))                          # [1, E, S]
    e = jnp.einsum('be,bes->bs', v[None], alpha)                     # [1, S]
    return jax.nn.softmax(e, axis=1)


if __name__ == "__main__":
    emb_dim = 32
    seq_len = 8
    b = 1  # PyTorch module only supports b == 1 (cat/bmm shape constraints)

    key = jax.random.PRNGKey(0)
    k_v, k_w, k_b, k_h, k_e = jax.random.split(key, 5)

    # Parameter init (deterministic, matching shapes from __init__):
    #   v ~ U[0,1) of shape [emb_dim]; Linear(2E, E) weight/bias ~ U(-k, k), k=1/sqrt(2E)
    v = jax.random.uniform(k_v, (emb_dim,), dtype=jnp.float32)
    bound = 1.0 / jnp.sqrt(2.0 * emb_dim)
    weight = jax.random.uniform(k_w, (emb_dim, 2 * emb_dim), dtype=jnp.float32,
                                minval=-bound, maxval=bound)
    bias = jax.random.uniform(k_b, (emb_dim,), dtype=jnp.float32,
                              minval=-bound, maxval=bound)

    hidden = jax.random.normal(k_h, (b, 1, emb_dim), dtype=jnp.float32)
    encoder_outputs = jax.random.normal(k_e, (seq_len, emb_dim), dtype=jnp.float32)

    out = attention_forward(hidden, encoder_outputs, weight, bias, v)
    out = jax.block_until_ready(out)

    ref = attention_reference(hidden, encoder_outputs, weight, bias, v)
    assert out.shape == (b, seq_len)
    # approx EUP reciprocal in the softmax epilogue -> slightly relaxed tolerance
    assert jnp.allclose(out, ref, atol=1e-3, rtol=1e-3), (out, ref)
    assert jnp.allclose(jnp.sum(out, axis=1), 1.0, atol=2e-3)

    print("KERNEL_OK")
</pallas_src>

<mosaic_0001>
module attributes {stable_mosaic.version = 11 : i64} {
  func.func @attention_kernel(%arg0: memref<8x32xf32, #tpu.memory_space<vmem>>, %arg1: memref<32x32xf32, #tpu.memory_space<vmem>>, %arg2: memref<1x32xf32, #tpu.memory_space<vmem>>, %arg3: memref<1x32xf32, #tpu.memory_space<vmem>>, %arg4: memref<1x8xf32, #tpu.memory_space<vmem>>) attributes {dimension_semantics = [], scalar_prefetch = 0 : i64, scratch_operands = 0 : i64, tpu.core_type = #tpu.core_type<tc>} {
    %c0 = arith.constant 0 : index
    %c0_0 = arith.constant 0 : index
    %0 = vector.load %arg0[%c0, %c0_0] : memref<8x32xf32, #tpu.memory_space<vmem>>, vector<8x32xf32>
    %c0_1 = arith.constant 0 : index
    %c0_2 = arith.constant 0 : index
    %1 = vector.load %arg1[%c0_1, %c0_2] : memref<32x32xf32, #tpu.memory_space<vmem>>, vector<32x32xf32>
    %cst = arith.constant dense<0.000000e+00> : vector<8x32xf32>
    %2 = tpu.matmul %0, %1, %cst {dimension_numbers = #tpu.dot_dimension_numbers<[1], [1], [0], [0], [0, 0, 1, 0], [], []>} : vector<8x32xf32>, vector<32x32xf32>, vector<8x32xf32> -> vector<8x32xf32>
    %c0_3 = arith.constant 0 : index
    %c0_4 = arith.constant 0 : index
    %3 = vector.load %arg2[%c0_3, %c0_4] : memref<1x32xf32, #tpu.memory_space<vmem>>, vector<1x32xf32>
    %4 = vector.broadcast %3 : vector<1x32xf32> to vector<8x32xf32>
    %5 = arith.addf %2, %4 : vector<8x32xf32>
    %6 = math.tanh %5 : vector<8x32xf32>
    %c0_5 = arith.constant 0 : index
    %c0_6 = arith.constant 0 : index
    %7 = vector.load %arg3[%c0_5, %c0_6] : memref<1x32xf32, #tpu.memory_space<vmem>>, vector<1x32xf32>
    %cst_7 = arith.constant dense<0.000000e+00> : vector<1x8xf32>
    %8 = tpu.matmul %7, %6, %cst_7 {dimension_numbers = #tpu.dot_dimension_numbers<[1], [1], [0], [0], [0, 0, 1, 0], [], []>} : vector<1x32xf32>, vector<8x32xf32>, vector<1x8xf32> -> vector<1x8xf32>
    %cst_8 = arith.constant dense<0xFF800000> : vector<1xf32>
    %9 = vector.multi_reduction <maximumf>, %8, %cst_8 [1] : vector<1x8xf32> to vector<1xf32>
    %10 = vector.shape_cast %9 : vector<1xf32> to vector<1x1xf32>
    %11 = vector.broadcast %10 : vector<1x1xf32> to vector<1x8xf32>
    %12 = arith.subf %8, %11 : vector<1x8xf32>
    %13 = math.exp %12 : vector<1x8xf32>
    %cst_9 = arith.constant dense<0.000000e+00> : vector<1xf32>
    %14 = vector.multi_reduction <add>, %13, %cst_9 [1] : vector<1x8xf32> to vector<1xf32>
    %15 = vector.shape_cast %14 : vector<1xf32> to vector<1x1xf32>
    %16 = tpu.reciprocal %15 {approx = true} : vector<1x1xf32> -> vector<1x1xf32>
    %17 = vector.broadcast %16 : vector<1x1xf32> to vector<1x8xf32>
    %18 = arith.mulf %13, %17 : vector<1x8xf32>
    %c0_10 = arith.constant 0 : index
    %c0_11 = arith.constant 0 : index
    %19 = vector.load %arg4[%c0_10, %c0_11] : memref<1x8xf32, #tpu.memory_space<vmem>>, vector<1x8xf32>
    tpu.vector_store %arg4[%c0_10, %c0_11], %18 {strides = array<i32>} : memref<1x8xf32, #tpu.memory_space<vmem>>, vector<1x8xf32>,
    return
  }
}

</mosaic_0001>

<llo_original>
// kernel: tpu_custom_call.1
$region0: #{tpu_custom_call.1}
  #allocation0 [shape = 'u32[]', space=smem, size = 0x4, offset = 0x4, fixed_abs, tag = 'smem constant byte address 0x4 - core index']
  #allocation1 [shape = 'u32[144,128]{1,0:T(1,128)}', space=vmem, size = 0x12000, scoped, tag = 'internal scratch']
  %s0 = inlined_call_operand.hbm [shape: f32[8,32], index: 0, kind: input, shape index: {}]
  %s1 = inlined_call_operand.hbm [shape: f32[32,32], index: 1, kind: input, shape index: {}]
  %s2 = inlined_call_operand.vmem [shape: f32[1,32], index: 2, kind: input, shape index: {}]
  %s3 = inlined_call_operand.vmem [shape: f32[1,32], index: 3, kind: input, shape index: {}]
  %s4 = inlined_call_operand.hbm [shape: f32[1,8], index: 4, kind: output, shape index: {}]
  %s5 = sld [smem:[#allocation0]]
  $region34: #{tpu_custom_call.1} parent=0
    _
  %s7 = ssub.s32 1, %s5
  %s8 = scalar_select 0, %s7, %s5
  $region1: #{tpu_custom_call.1} parent=0
    #allocation2 [shape = 'u8[4096]{0}', space=vmem, size = 0x1000, scoped, tag = 'input window, operand 0, single buffered']
    #allocation3 [shape = 's32[1]{0}', space=sflag, size = 0x4, scoped, tag = 'scoped memory for tpu_custom_call.1']
    #allocation4 [shape = 's32[1]{0}', space=sflag, size = 0x4, scoped, tag = 'scoped memory for tpu_custom_call.1']
    #allocation5 [shape = 'u8[16384]{0}', space=vmem, size = 0x4000, scoped, tag = 'input window, operand 1, single buffered']
    #allocation6 [shape = 's32[1]{0}', space=sflag, size = 0x4, scoped, tag = 'scoped memory for tpu_custom_call.1']
    #allocation7 [shape = 'u8[512]{0}', space=vmem, size = 0x400, scoped, tag = 'output window, operand 0, single buffered']
    %9 = vsyncpa [#allocation3], 0
    %10 = vsyncpa [#allocation6], 0
    %11 = vsyncpa [#allocation4], 0
    // Predicated region
    $region2: #{tpu_custom_call.1} parent=1 // pred_check
      _
    $region3: #{tpu_custom_call.1} parent=1 // pred_check_branch
      %13 = sbr.rel (0) target = $region5
    $region4: #{tpu_custom_call.1} parent=1 // pred_region
      %s15 = ssub.s32 128, 128
      %16 = vsyncadd [#allocation3], %s15
      %s18 = sshll.u32 [#allocation2], 4
      %s19 = int_to_ptr.vmem [resolvable:$true] %s18
      %21 = dma.hbm_to_vmem [thread:$0]  %s0, 128, %s19, [#allocation3]
    $region5: #{tpu_custom_call.1} parent=1 // pred_fallthru
      _
    // Predicated region
    $region6: #{tpu_custom_call.1} parent=1 // pred_check
      _
    $region7: #{tpu_custom_call.1} parent=1 // pred_check_branch
      %23 = sbr.rel (0) target = $region9
    $region8: #{tpu_custom_call.1} parent=1 // pred_region
      %s25 = ssub.s32 512, 512
      %26 = vsyncadd [#allocation6], %s25
      %s27 = sshll.u32 [#allocation5], 4
      %s28 = int_to_ptr.vmem [resolvable:$true] %s27
      %33 = dma.hbm_to_vmem [thread:$0]  %s1, 512, %s28, [#allocation6], 128, 128, 8
    $region9: #{tpu_custom_call.1} parent=1 // pred_fallthru
      _
    // Predicated region
    $region10: #{tpu_custom_call.1} parent=1 // pred_check
      _
    $region11: #{tpu_custom_call.1} parent=1 // pred_check_branch
      %35 = sbr.rel (0) target = $region13
    $region12: #{tpu_custom_call.1} parent=1 // pred_region
      _
    $region13: #{tpu_custom_call.1} parent=1 // pred_fallthru
      _
    // Predicated region
    $region14: #{tpu_custom_call.1} parent=1 // pred_check
      _
    $region15: #{tpu_custom_call.1} parent=1 // pred_check_branch
      %37 = sbr.rel (0) target = $region17
    $region16: #{tpu_custom_call.1} parent=1 // pred_region
      _
    $region17: #{tpu_custom_call.1} parent=1 // pred_fallthru
      _
    // Predicated region
    $region18: #{tpu_custom_call.1} parent=1 // pred_check
      _
    $region19: #{tpu_custom_call.1} parent=1 // pred_check_branch
      %39 = sbr.rel (0) target = $region21
    $region20: #{tpu_custom_call.1} parent=1 // pred_region
      %40 = dma.done [#allocation3], 128
    $region21: #{tpu_custom_call.1} parent=1 // pred_fallthru
      _
    // Predicated region
    $region22: #{tpu_custom_call.1} parent=1 // pred_check
      _
    $region23: #{tpu_custom_call.1} parent=1 // pred_check_branch
      %42 = sbr.rel (0) target = $region25
    $region24: #{tpu_custom_call.1} parent=1 // pred_region
      %43 = dma.done [#allocation6], 512
    $region25: #{tpu_custom_call.1} parent=1 // pred_fallthru
      _
    %v44 = vld [vmem:[#allocation2] sm:$0xff]
    %v45 = vld [vmem:[#allocation5] sm:$0xff]
    %v46 = vld [vmem:[#allocation5 + $0x8] sm:$0xff]
    %v47 = vld [vmem:[#allocation5 + $0x10] sm:$0xff]
    %v48 = vld [vmem:[#allocation5 + $0x18] sm:$0xff]
    %v49 = vld [vmem:[%s2] sm:$0x1]
    %v51 = vlaneseq
    %v52 = vshrl.u32 %v51, 7
    %v53 = vsub.s32 0, %v52
    %v54 = vrot.slane %v49, %v53
    %vm56 = vcmask 261120
    %v58 = vsel %vm56, %v44, 0
    %v61 = vsel %vm56, %v45, 0
    %v64 = vsel %vm56, %v46, 0
    %v67 = vsel %vm56, %v47, 0
    %v70 = vsel %vm56, %v48, 0
    %72 = vmatprep.subr.mxu0 0.0
    %73 = vmatpush1.xpose.msra.mxu0 %v61
    %74 = vmatprep.subr.mxu0 0.0
    %75 = vmatpush1.xpose.msra.mxu0 %v64
    %76 = vmatprep.subr.mxu0 0.0
    %77 = vmatpush1.xpose.msra.mxu0 %v67
    %78 = vmatprep.subr.mxu0 0.0
    %79 = vmatpush1.xpose.msra.mxu0 %v70
    %80 = vmatprep.subr.mxu0 0.0
    %81 = vmatpush1.xpose.msra.mxu0 0.0
    %82 = vmatprep.subr.mxu0 0.0
    %83 = vmatpush1.xpose.msra.mxu0 0.0
    %84 = vmatprep.subr.mxu0 0.0
    %85 = vmatpush1.xpose.msra.mxu0 0.0
    %86 = vmatprep.subr.mxu0 0.0
    %87 = vmatpush1.xpose.msra.mxu0 0.0
    %88 = vmatprep.subr.mxu0 0.0
    %89 = vmatpush1.xpose.msra.mxu0 0.0
    %90 = vmatprep.subr.mxu0 0.0
    %91 = vmatpush1.xpose.msra.mxu0 0.0
    %92 = vmatprep.subr.mxu0 0.0
    %93 = vmatpush1.xpose.msra.mxu0 0.0
    %94 = vmatprep.subr.mxu0 0.0
    %95 = vmatpush1.xpose.msra.mxu0 0.0
    %96 = vmatprep.subr.mxu0 0.0
    %97 = vmatpush1.xpose.msra.mxu0 0.0
    %98 = vmatprep.subr.mxu0 0.0
    %99 = vmatpush1.xpose.msra.mxu0 0.0
    %100 = vmatprep.subr.mxu0 0.0
    %101 = vmatpush1.xpose.msra.mxu0 0.0
    %102 = vmatprep.subr.mxu0 0.0
    %103 = vmatpush1.xpose.msra.mxu0 0.0
    %104 = vmatprep.subr.mxu0 0.0
    %105 = vmatpush1.xpose.msra.mxu0 0.0
    %106 = vmatprep.subr.mxu0 0.0
    %107 = vmatpush1.xpose.msra.mxu0 0.0
    %108 = vmatprep.subr.mxu0 0.0
    %109 = vmatpush1.xpose.msra.mxu0 0.0
    %110 = vmatprep.subr.mxu0 0.0
    %111 = vmatpush1.xpose.msra.mxu0 0.0
    %112 = vmatprep.subr.mxu0 0.0
    %113 = vmatpush1.xpose.msra.mxu0 0.0
    %114 = vmatprep.subr.mxu0 0.0
    %115 = vmatpush1.xpose.msra.mxu0 0.0
    %116 = vmatprep.subr.mxu0 0.0
    %117 = vmatpush1.xpose.msra.mxu0 0.0
    %118 = vmatprep.subr.mxu0 0.0
    %119 = vmatpush1.xpose.msra.mxu0 0.0
    %120 = vmatprep.subr.mxu0 0.0
    %121 = vmatpush1.xpose.msra.mxu0 0.0
    %122 = vmatprep.subr.mxu0 0.0
    %123 = vmatpush1.xpose.msra.mxu0 0.0
    %124 = vmatprep.subr.mxu0 0.0
    %125 = vmatpush1.xpose.msra.mxu0 0.0
    %126 = vmatprep.subr.mxu0 0.0
    %127 = vmatpush1.xpose.msra.mxu0 0.0
    %128 = vmatprep.subr.mxu0 0.0
    %129 = vmatpush1.xpose.msra.mxu0 0.0
    %130 = vmatprep.subr.mxu0 0.0
    %131 = vmatpush1.xpose.msra.mxu0 0.0
    %132 = vmatprep.subr.mxu0 0.0
    %133 = vmatpush1.xpose.msra.mxu0 0.0
    %134 = vmatprep.subr.mxu0 0.0
    %135 = vmatpush1.xpose.msra.mxu0 0.0
    %136 = vmatprep.mubr.f32.mxu0 0.0
    %137 = vmatmul.mubr.f32.gmra.mrb[0].mxu0 %v58
    %v138 = vpop.f32.mrb[0].mxu0
    %v139 = vadd.f32 %v54, %v138
    %v140 = vpop.f32.mrb[0].mxu0
    %141 = vdwg.mxu0
    %v142 = vtanh.pop %v139
    %v143 = vld [vmem:[%s3] sm:$0x1]
    %v145 = vsel %vm56, %v143, 0
    %v148 = vsel %vm56, %v142, 0
    %150 = vmatprep.subr.mxu0 0.0
    %151 = vmatpush1.xpose.msra.mxu0 %v148
    %152 = vmatprep.subr.mxu0 0.0
    %153 = vmatpush1.xpose.msra.mxu0 0.0
    %154 = vmatprep.subr.mxu0 0.0
    %155 = vmatpush1.xpose.msra.mxu0 0.0
    %156 = vmatprep.subr.mxu0 0.0
    %157 = vmatpush1.xpose.msra.mxu0 0.0
    %158 = vmatprep.subr.mxu0 0.0
    %159 = vmatpush1.xpose.msra.mxu0 0.0
    %160 = vmatprep.subr.mxu0 0.0
    %161 = vmatpush1.xpose.msra.mxu0 0.0
    %162 = vmatprep.subr.mxu0 0.0
    %163 = vmatpush1.xpose.msra.mxu0 0.0
    %164 = vmatprep.subr.mxu0 0.0
    %165 = vmatpush1.xpose.msra.mxu0 0.0
    %166 = vmatprep.subr.mxu0 0.0
    %167 = vmatpush1.xpose.msra.mxu0 0.0
    %168 = vmatprep.subr.mxu0 0.0
    %169 = vmatpush1.xpose.msra.mxu0 0.0
    %170 = vmatprep.subr.mxu0 0.0
    %171 = vmatpush1.xpose.msra.mxu0 0.0
    %172 = vmatprep.subr.mxu0 0.0
    %173 = vmatpush1.xpose.msra.mxu0 0.0
    %174 = vmatprep.subr.mxu0 0.0
    %175 = vmatpush1.xpose.msra.mxu0 0.0
    %176 = vmatprep.subr.mxu0 0.0
    %177 = vmatpush1.xpose.msra.mxu0 0.0
    %178 = vmatprep.subr.mxu0 0.0
    %179 = vmatpush1.xpose.msra.mxu0 0.0
    %180 = vmatprep.subr.mxu0 0.0
    %181 = vmatpush1.xpose.msra.mxu0 0.0
    %182 = vmatprep.subr.mxu0 0.0
    %183 = vmatpush1.xpose.msra.mxu0 0.0
    %184 = vmatprep.subr.mxu0 0.0
    %185 = vmatpush1.xpose.msra.mxu0 0.0
    %186 = vmatprep.subr.mxu0 0.0
    %187 = vmatpush1.xpose.msra.mxu0 0.0
    %188 = vmatprep.subr.mxu0 0.0
    %189 = vmatpush1.xpose.msra.mxu0 0.0
    %190 = vmatprep.subr.mxu0 0.0
    %191 = vmatpush1.xpose.msra.mxu0 0.0
    %192 = vmatprep.subr.mxu0 0.0
    %193 = vmatpush1.xpose.msra.mxu0 0.0
    %194 = vmatprep.subr.mxu0 0.0
    %195 = vmatpush1.xpose.msra.mxu0 0.0
    %196 = vmatprep.subr.mxu0 0.0
    %197 = vmatpush1.xpose.msra.mxu0 0.0
    %198 = vmatprep.subr.mxu0 0.0
    %199 = vmatpush1.xpose.msra.mxu0 0.0
    %200 = vmatprep.subr.mxu0 0.0
    %201 = vmatpush1.xpose.msra.mxu0 0.0
    %202 = vmatprep.subr.mxu0 0.0
    %203 = vmatpush1.xpose.msra.mxu0 0.0
    %204 = vmatprep.subr.mxu0 0.0
    %205 = vmatpush1.xpose.msra.mxu0 0.0
    %206 = vmatprep.subr.mxu0 0.0
    %207 = vmatpush1.xpose.msra.mxu0 0.0
    %208 = vmatprep.subr.mxu0 0.0
    %209 = vmatpush1.xpose.msra.mxu0 0.0
    %210 = vmatprep.subr.mxu0 0.0
    %211 = vmatpush1.xpose.msra.mxu0 0.0
    %212 = vmatprep.subr.mxu0 0.0
    %213 = vmatpush1.xpose.msra.mxu0 0.0
    %214 = vmatprep.mubr.f32.mxu0 0.0
    %215 = vmatmul.mubr.f32.gmra.mrb[0].mxu0 %v145
    %v216 = vpop.f32.mrb[0].mxu0
    %v217 = vadd.f32 0.0, %v216
    %v218 = vpop.f32.mrb[0].mxu0
    %219 = vdwg.mxu0
    %vm220 = vcmask 57344
    %v221 = vsel %vm220, %v217, -inf
    %222 = vmax.xlane.f32.xlu0 %v221
    %v223 = vpop.xlane.xlu0 %222
    %v224 = vsub.f32 %v217, %v223
    %v225 = vmul.f32 %v224, 1.442695
    %v226 = vpow.pop %v225
    %v227 = vsel %vm220, %v226, 0.0
    %228 = vadd.xlane.f32.xlu0 %v227
    %v229 = vpop.xlane.xlu0 %228
    %v230 = vrcp.pop %v229
    %v231 = vmul.f32 %v226, %v230
    %232 = vst.msk [vmem:[#allocation7] sm:$0x1] %vm220, %v231
    // Predicated region
    $region26: #{tpu_custom_call.1} parent=1 // pred_check
      _
    $region27: #{tpu_custom_call.1} parent=1 // pred_check_branch
      %234 = sbr.rel (0) target = $region29
    $region28: #{tpu_custom_call.1} parent=1 // pred_region
      %s236 = ssub.s32 16, 16
      %237 = vsyncadd [#allocation4], %s236
      %s239 = sshll.u32 [#allocation7], 4
      %s240 = int_to_ptr.vmem [resolvable:$true] %s239
      %242 = dma.vmem_to_hbm [thread:$0]  %s240, 16, %s4, [#allocation4]
    $region29: #{tpu_custom_call.1} parent=1 // pred_fallthru
      _
    // Predicated region
    $region30: #{tpu_custom_call.1} parent=1 // pred_check
      _
    $region31: #{tpu_custom_call.1} parent=1 // pred_check_branch
      %244 = sbr.rel (0) target = $region33
    $region32: #{tpu_custom_call.1} parent=1 // pred_region
      %245 = dma.done [#allocation4], 16
    $region33: #{tpu_custom_call.1} parent=1 // pred_fallthru
      _
    %246 = vsyncpa [#allocation3], 1
    %247 = vsyncpa [#allocation6], 1
    %248 = vsyncpa [#allocation4], 1

</llo_original>
